<compile_context>
chip_gen: v7x
topology: tpu7x:2x2x1
jax: 0.10.0
libtpu: 0.0.40
codegen_flags: <defaults>
</compile_context>

<pallas_src>
import functools

import jax
import jax.numpy as jnp
from jax.experimental import pallas as pl
from jax.experimental.pallas import tpu as pltpu


def _agg_kernel(a_ref, p_ref, b_ref, o_ref, acc_ref, *, apply_relu):
    """One row-tile of  out = [relu](A_hat @ P + b)  accumulated over the k axis."""
    k = pl.program_id(1)

    @pl.when(k == 0)
    def _init():
        acc_ref[...] = jnp.zeros_like(acc_ref)

    acc_ref[...] += jnp.dot(
        a_ref[...], p_ref[...], preferred_element_type=jnp.float32
    )

    @pl.when(k == pl.num_programs(1) - 1)
    def _finish():
        out = acc_ref[...] + b_ref[...]
        if apply_relu:
            out = jnp.maximum(out, 0.0)
        o_ref[...] = out


def _round_up(x, m):
    return ((x + m - 1) // m) * m


def gcn_aggregate(a_bf16, payload, bias, *, apply_relu, tm=128, tk=128):
    """Compute [relu](A_hat @ payload + bias) with A_hat streamed in bf16 tiles.

    a_bf16:  [N, N] bf16 normalized adjacency
    payload: [N, C] f32  (already the X@W product; C is small)
    bias:    [1, C] f32
    """
    assert tm == tk, "keep row/contraction tiles equal so one N-pad works"
    n = a_bf16.shape[0]
    c = payload.shape[1]
    n_pad = _round_up(n, tm)
    c_pad = _round_up(c, 128)  # lane-dense payload / output

    a_p = jnp.pad(a_bf16, ((0, n_pad - n), (0, n_pad - n)))
    p_p = jnp.pad(payload.astype(jnp.bfloat16), ((0, n_pad - n), (0, c_pad - c)))
    b_p = jnp.pad(bias.astype(jnp.float32), ((0, 0), (0, c_pad - c)))

    grid = (n_pad // tm, n_pad // tk)

    out = pl.pallas_call(
        functools.partial(_agg_kernel, apply_relu=apply_relu),
        out_shape=jax.ShapeDtypeStruct((n_pad, c_pad), jnp.float32),
        grid_spec=pltpu.PrefetchScalarGridSpec(
            num_scalar_prefetch=0,
            grid=grid,
            in_specs=[
                pl.BlockSpec((tm, tk), lambda i, k: (i, k)),      # A_hat tile (bf16)
                pl.BlockSpec((tk, c_pad), lambda i, k: (k, 0)),   # payload slab
                pl.BlockSpec((1, c_pad), lambda i, k: (0, 0)),    # bias (resident)
            ],
            out_specs=pl.BlockSpec((tm, c_pad), lambda i, k: (i, 0)),
            scratch_shapes=[pltpu.VMEM((tm, c_pad), jnp.float32)],
        ),
        compiler_params=pltpu.CompilerParams(
            dimension_semantics=("parallel", "arbitrary")
        ),
    )(a_p, p_p, b_p)
    return out[:n, :c]


def gcn_encoder(a_hat, x, w1, b1, w2, b2, *, tm=128, tk=128):
    """Two-layer GCN forward. Tiny feature GEMMs run in XLA; aggregations in Pallas."""
    a_bf16 = a_hat.astype(jnp.bfloat16)  # halves dominant HBM traffic
    xw = jnp.dot(x, w1)                                  # [N, hidden], small GEMM
    h = gcn_aggregate(a_bf16, xw, b1, apply_relu=True, tm=tm, tk=tk)
    hw = jnp.dot(h, w2)                                  # [N, out], small GEMM
    return gcn_aggregate(a_bf16, hw, b2, apply_relu=False, tm=tm, tk=tk)


def build_normalized_adjacency(edge_index, num_nodes):
    """Dense A_hat = D^{-1/2} (A + remaining self-loops) D^{-1/2} from [2, E] edge_index.

    Matches PyG gcn_norm: existing self-loops are kept as-is; a unit self-loop is
    added only for nodes that have none.
    """
    src, dst = edge_index[0], edge_index[1]
    a = jnp.zeros((num_nodes, num_nodes), dtype=jnp.float32)
    a = a.at[dst, src].add(1.0)  # message flows src -> dst
    missing_self = jnp.where(jnp.diag(a) > 0, 0.0, 1.0)
    a = a + jnp.diag(missing_self)
    deg = a.sum(axis=1)
    d_inv_sqrt = jnp.where(deg > 0, 1.0 / jnp.sqrt(deg), 0.0)
    return d_inv_sqrt[:, None] * a * d_inv_sqrt[None, :]


def glorot(key, shape):
    fan_in, fan_out = shape
    limit = jnp.sqrt(6.0 / (fan_in + fan_out))
    return jax.random.uniform(key, shape, jnp.float32, -limit, limit)


if __name__ == "__main__":
    key = jax.random.PRNGKey(0)
    k_x, k_e, k_w1, k_w2 = jax.random.split(key, 4)

    num_nodes = 256          # > one 128-tile so both grid axes actually iterate
    in_channels = 8
    hidden_channels = 32
    out_channels = 16
    num_edges = 512

    x = jax.random.normal(k_x, (num_nodes, in_channels), dtype=jnp.float32)
    edge_index = jax.random.randint(k_e, (2, num_edges), 0, num_nodes, dtype=jnp.int32)

    # GCNConv init: glorot weight (stored [in, out] = torch weight transposed), zero bias
    w1 = glorot(k_w1, (in_channels, hidden_channels))
    b1 = jnp.zeros((1, hidden_channels), dtype=jnp.float32)
    w2 = glorot(k_w2, (hidden_channels, out_channels))
    b2 = jnp.zeros((1, out_channels), dtype=jnp.float32)

    a_hat = build_normalized_adjacency(edge_index, num_nodes)

    out = gcn_encoder(a_hat, x, w1, b1, w2, b2)
    out = jax.block_until_ready(out)

    # Pure-JAX reference with the same bf16 streaming of A_hat / payloads,
    # f32 accumulation (differences vs the kernel are accumulation-order only,
    # plus possible 1-ulp bf16 rounding of h before layer 2).
    a_ref = a_hat.astype(jnp.bfloat16).astype(jnp.float32)
    xw_ref = jnp.dot(x, w1).astype(jnp.bfloat16).astype(jnp.float32)
    h_ref = jnp.maximum(a_ref @ xw_ref + b1, 0.0)
    hw_ref = jnp.dot(h_ref, w2).astype(jnp.bfloat16).astype(jnp.float32)
    ref = a_ref @ hw_ref + b2

    assert out.shape == (num_nodes, out_channels)
    assert jnp.allclose(out, ref, atol=1e-2, rtol=1e-2), float(
        jnp.max(jnp.abs(out - ref))
    )

    print("KERNEL_OK")
</pallas_src>

<mosaic_0001>
module attributes {stable_mosaic.version = 11 : i64} {
  func.func @_agg_kernel(%arg0: i32, %arg1: i32, %arg2: memref<128x128xbf16, #tpu.memory_space<vmem>>, %arg3: memref<128x128xbf16, #tpu.memory_space<vmem>>, %arg4: memref<1x128xf32, #tpu.memory_space<vmem>>, %arg5: memref<128x128xf32, #tpu.memory_space<vmem>>, %arg6: memref<128x128xf32, #tpu.memory_space<vmem>>) attributes {dimension_semantics = [#tpu.dimension_semantics<parallel>, #tpu.dimension_semantics<arbitrary>], iteration_bounds = array<i64: 2, 2>, scalar_prefetch = 0 : i64, scratch_operands = 1 : i64, tpu.core_type = #tpu.core_type<tc>, window_params = [{transform_indices = @transform_0, window_bounds = array<i64: 128, 128>}, {transform_indices = @transform_1, window_bounds = array<i64: 128, 128>}, {pipeline_mode = #tpu.pipeline_mode<synchronous>, transform_indices = @transform_2, window_bounds = array<i64: 1, 128>}, {transform_indices = @transform_3, window_bounds = array<i64: 128, 128>}]} {
    %c0_i32 = arith.constant 0 : i32
    %0 = arith.cmpi eq, %arg1, %c0_i32 : i32
    %1 = arith.extui %0 : i1 to i32
    %c0_i32_0 = arith.constant 0 : i32
    %2 = arith.cmpi ne, %1, %c0_i32_0 : i32
    scf.if %2 {
      %cst_9 = arith.constant 0.000000e+00 : f32
      %12 = vector.broadcast %cst_9 : f32 to vector<128x128xf32>
      %c0_10 = arith.constant 0 : index
      %c0_11 = arith.constant 0 : index
      %13 = vector.load %arg6[%c0_10, %c0_11] : memref<128x128xf32, #tpu.memory_space<vmem>>, vector<128x128xf32>
      tpu.vector_store %arg6[%c0_10, %c0_11], %12 {strides = array<i32>} : memref<128x128xf32, #tpu.memory_space<vmem>>, vector<128x128xf32>,
    } else {
    }
    %c0 = arith.constant 0 : index
    %c0_1 = arith.constant 0 : index
    %3 = vector.load %arg6[%c0, %c0_1] : memref<128x128xf32, #tpu.memory_space<vmem>>, vector<128x128xf32>
    %c0_2 = arith.constant 0 : index
    %c0_3 = arith.constant 0 : index
    %4 = vector.load %arg2[%c0_2, %c0_3] : memref<128x128xbf16, #tpu.memory_space<vmem>>, vector<128x128xbf16>
    %c0_4 = arith.constant 0 : index
    %c0_5 = arith.constant 0 : index
    %5 = vector.load %arg3[%c0_4, %c0_5] : memref<128x128xbf16, #tpu.memory_space<vmem>>, vector<128x128xbf16>
    %cst = arith.constant dense<0.000000e+00> : vector<128x128xf32>
    %6 = tpu.matmul %4, %5, %cst {dimension_numbers = #tpu.dot_dimension_numbers<[1], [0], [0], [1], [0, 0, 1, 1], [], []>} : vector<128x128xbf16>, vector<128x128xbf16>, vector<128x128xf32> -> vector<128x128xf32>
    %7 = arith.addf %3, %6 : vector<128x128xf32>
    %c0_6 = arith.constant 0 : index
    %c0_7 = arith.constant 0 : index
    %8 = vector.load %arg6[%c0_6, %c0_7] : memref<128x128xf32, #tpu.memory_space<vmem>>, vector<128x128xf32>
    tpu.vector_store %arg6[%c0_6, %c0_7], %7 {strides = array<i32>} : memref<128x128xf32, #tpu.memory_space<vmem>>, vector<128x128xf32>,
    %c1_i32 = arith.constant 1 : i32
    %9 = arith.cmpi eq, %arg1, %c1_i32 : i32
    %10 = arith.extui %9 : i1 to i32
    %c0_i32_8 = arith.constant 0 : i32
    %11 = arith.cmpi ne, %10, %c0_i32_8 : i32
    scf.if %11 {
      %c0_9 = arith.constant 0 : index
      %c0_10 = arith.constant 0 : index
      %12 = vector.load %arg6[%c0_9, %c0_10] : memref<128x128xf32, #tpu.memory_space<vmem>>, vector<128x128xf32>
      %c0_11 = arith.constant 0 : index
      %c0_12 = arith.constant 0 : index
      %13 = vector.load %arg4[%c0_11, %c0_12] : memref<1x128xf32, #tpu.memory_space<vmem>>, vector<1x128xf32>
      %14 = vector.broadcast %13 : vector<1x128xf32> to vector<128x128xf32>
      %15 = arith.addf %12, %14 : vector<128x128xf32>
      %cst_13 = arith.constant 0.000000e+00 : f32
      %16 = vector.broadcast %cst_13 : f32 to vector<128x128xf32>
      %17 = arith.maximumf %15, %16 : vector<128x128xf32>
      %c0_14 = arith.constant 0 : index
      %c0_15 = arith.constant 0 : index
      %18 = vector.load %arg5[%c0_14, %c0_15] : memref<128x128xf32, #tpu.memory_space<vmem>>, vector<128x128xf32>
      tpu.vector_store %arg5[%c0_14, %c0_15], %17 {strides = array<i32>} : memref<128x128xf32, #tpu.memory_space<vmem>>, vector<128x128xf32>,
    } else {
    }
    return
  }
  func.func @transform_0(%arg0: i32, %arg1: i32) -> (i32, i32) {
    %c0_i32 = arith.constant 0 : i32
    return %arg0, %arg1 : i32, i32
  }
  func.func @transform_1(%arg0: i32, %arg1: i32) -> (i32, i32) {
    %c0_i32 = arith.constant 0 : i32
    %c0_i32_0 = arith.constant 0 : i32
    return %arg1, %c0_i32 : i32, i32
  }
  func.func @transform_2(%arg0: i32, %arg1: i32) -> (i32, i32) {
    %c0_i32 = arith.constant 0 : i32
    %c0_i32_0 = arith.constant 0 : i32
    %c0_i32_1 = arith.constant 0 : i32
    return %c0_i32, %c0_i32_0 : i32, i32
  }
  func.func @transform_3(%arg0: i32, %arg1: i32) -> (i32, i32) {
    %c0_i32 = arith.constant 0 : i32
    %c0_i32_0 = arith.constant 0 : i32
    return %arg0, %c0_i32 : i32, i32
  }
}

</mosaic_0001>

<llo_original>
// kernel: tpu_custom_call.1
$region0: #{tpu_custom_call.1}
  #allocation0 [shape = 'u32[]', space=smem, size = 0x4, offset = 0x4, fixed_abs, tag = 'smem constant byte address 0x4 - core index']
  #allocation1 [shape = 'u32[144,128]{1,0:T(1,128)}', space=vmem, size = 0x12000, scoped, tag = 'internal scratch']
  #allocation2 [shape = 'f32[128,128]{1,0:T(8,128)}', space=vmem, size = 0x10000, scoped, tag = 'scratch operand']
  %s0 = inlined_call_operand.hbm [shape: bf16[256,256], index: 0, kind: input, shape index: {}]
  %s1 = inlined_call_operand.hbm [shape: bf16[256,128], index: 1, kind: input, shape index: {}]
  %s2 = inlined_call_operand.vmem [shape: f32[1,128], index: 2, kind: input, shape index: {}]
  %s3 = inlined_call_operand.hbm [shape: f32[256,128], index: 3, kind: output, shape index: {}]
  %s4 = sld [smem:[#allocation0]]
  $region61: #{tpu_custom_call.1} parent=0
    _
  %s6 = ssub.s32 1, %s4
  %s7 = scalar_select 0, %s6, %s4
  $region1: #{tpu_custom_call.1} parent=0
    #allocation3 [shape = 'u8[65536]{0}', space=vmem, size = 0x10000, scoped, tag = 'input window, operand 0']
    #allocation4 [shape = 's32[2]{0}', space=sflag, size = 0x8, scoped, tag = 'scoped memory for tpu_custom_call.1']
    #allocation5 [shape = 's32[2]{0}', space=sflag, size = 0x8, scoped, tag = 'scoped memory for tpu_custom_call.1']
    #allocation6 [shape = 'u8[65536]{0}', space=vmem, size = 0x10000, scoped, tag = 'input window, operand 1']
    #allocation7 [shape = 's32[2]{0}', space=sflag, size = 0x8, scoped, tag = 'scoped memory for tpu_custom_call.1']
    #allocation8 [shape = 'u8[131072]{0}', space=vmem, size = 0x20000, scoped, tag = 'output window, operand 0']
    %8 = vsyncpa [#allocation4], 0
    %s9 = scalar_lea.sflag [#allocation4], 1
    %10 = vsyncpa %s9, 0
    %11 = vsyncpa [#allocation7], 0
    %s12 = scalar_lea.sflag [#allocation7], 1
    %13 = vsyncpa %s12, 0
    %14 = vsyncpa [#allocation5], 0
    %s15 = scalar_lea.sflag [#allocation5], 1
    %16 = vsyncpa %s15, 0
    loop: start=0, step=1, limit=6
    $region2: #{tpu_custom_call.1} parent=1 // loop_pre_header
      _
    $region3: #{tpu_custom_call.1} parent=1 // loop_header
      %s18 = sphi 0, %s22
      %p19 = scmp.ge.s32.totalorder %s18, 6
      %s25 = sphi 0, %s37
      %s26 = sphi 0, %s33
      %s27 = sphi 0, %s25
      %s28 = sphi 0, %s26
      %s29 = sphi 0, %s27
      %s30 = sphi 0, %s28
      %s42 = sphi 0, %s44
      %s45 = sphi 0, %s42
      %s46 = sphi 0, %s45
      %s62 = sphi 0, %s46
      %s68 = sphi 0, %s70
      %s71 = sphi 0, %s68
      %s72 = sphi 0, %s71
      %s88 = sphi 0, %s72
      %s92 = sphi 0, %s92
      %s94 = sphi 0, %s92
      %s95 = sphi 0, %s94
      %s109 = sphi 0, %s95
      %s115 = sphi 0, %s117
      %s118 = sphi 0, %s115
      %s119 = sphi 0, %s118
      %s135 = sphi 0, %s119
    $region4: #{tpu_custom_call.1} parent=1 // loop_header_branch
      %21 = sbr.rel (%p19) target = $region8
    $region5: #{tpu_custom_call.1} parent=1 // loop_body
      %s23 = ssub.s32 %s18, 1
      %s24 = ssub.s32 %s18, 2
      %s31 = sadd.s32 1, %s26
      %p32 = scmp.ge.s32.totalorder %s31, 2
      %s33 = scalar_select %p32, 0, %s31
      %s34 = sadd.s32 1, %s25
      %s35 = scalar_select %p32, %s34, %s25
      %p36 = scmp.ge.s32.totalorder %s35, 2
      %s37 = scalar_select %p36, 0, %s35
      %s38 = ssub.s32 %s25, %s37
      %s39 = ssub.s32 %s26, %s33
      %s40 = sor.u32 %s38, %s39
      %p41 = scmp.eq.s32.totalorder %s40, 0
      %s43 = sadd.s32 %s42, 1
      %s44 = scalar_select %p41, %s42, %s43
      %p47 = pneg %p41
      %p48 = scmp.eq.s32.totalorder %s18, 3
      %p49 = por %p47, %p48
      %p50 = scmp.ne.s32.totalorder %s42, %s45
      %p51 = scmp.eq.s32.totalorder %s18, 0
      %p52 = por %p50, %p51
      %p53 = scmp.ne.s32.totalorder %s42, %s45
      %p54 = scmp.eq.s32.totalorder %s23, 3
      %p55 = por %p53, %p54
      %p56 = scmp.ne.s32.totalorder %s45, %s46
      %p57 = scmp.eq.s32.totalorder %s23, 0
      %p58 = por %p56, %p57
      %p59 = scmp.ne.s32.totalorder %s45, %s46
      %p60 = scmp.eq.s32.totalorder %s24, 3
      %p61 = por %p59, %p60
      %p63 = scmp.ne.s32.totalorder %s46, %s62
      %p64 = scmp.eq.s32.totalorder %s24, 0
      %p65 = por %p63, %p64
      %s66 = ssub.s32 %s26, %s33
      %p67 = scmp.eq.s32.totalorder %s66, 0
      %s69 = sadd.s32 %s68, 1
      %s70 = scalar_select %p67, %s68, %s69
      %p73 = pneg %p67
      %p74 = scmp.eq.s32.totalorder %s18, 3
      %p75 = por %p73, %p74
      %p76 = scmp.ne.s32.totalorder %s68, %s71
      %p77 = scmp.eq.s32.totalorder %s18, 0
      %p78 = por %p76, %p77
      %p79 = scmp.ne.s32.totalorder %s68, %s71
      %p80 = scmp.eq.s32.totalorder %s23, 3
      %p81 = por %p79, %p80
      %p82 = scmp.ne.s32.totalorder %s71, %s72
      %p83 = scmp.eq.s32.totalorder %s23, 0
      %p84 = por %p82, %p83
      %p85 = scmp.ne.s32.totalorder %s71, %s72
      %p86 = scmp.eq.s32.totalorder %s24, 3
      %p87 = por %p85, %p86
      %p89 = scmp.ne.s32.totalorder %s72, %s88
      %p90 = scmp.eq.s32.totalorder %s24, 0
      %p91 = por %p89, %p90
      %s93 = sadd.s32 %s92, 1
      %p96 = scmp.eq.s32.totalorder %s18, 3
      %p97 = scmp.ne.s32.totalorder %s92, %s94
      %p98 = scmp.eq.s32.totalorder %s18, 0
      %p99 = por %p97, %p98
      %p100 = scmp.ne.s32.totalorder %s92, %s94
      %p101 = scmp.eq.s32.totalorder %s23, 3
      %p102 = por %p100, %p101
      %p103 = scmp.ne.s32.totalorder %s94, %s95
      %p104 = scmp.eq.s32.totalorder %s23, 0
      %p105 = por %p103, %p104
      %p106 = scmp.ne.s32.totalorder %s94, %s95
      %p107 = scmp.eq.s32.totalorder %s24, 3
      %p108 = por %p106, %p107
      %p110 = scmp.ne.s32.totalorder %s95, %s109
      %p111 = scmp.eq.s32.totalorder %s24, 0
      %p112 = por %p110, %p111
      %s113 = ssub.s32 %s25, %s37
      %p114 = scmp.eq.s32.totalorder %s113, 0
      %s116 = sadd.s32 %s115, 1
      %s117 = scalar_select %p114, %s115, %s116
      %p120 = pneg %p114
      %p121 = scmp.eq.s32.totalorder %s18, 3
      %p122 = por %p120, %p121
      %p123 = scmp.ne.s32.totalorder %s115, %s118
      %p124 = scmp.eq.s32.totalorder %s18, 0
      %p125 = por %p123, %p124
      %p126 = scmp.ne.s32.totalorder %s115, %s118
      %p127 = scmp.eq.s32.totalorder %s23, 3
      %p128 = por %p126, %p127
      %p129 = scmp.ne.s32.totalorder %s118, %s119
      %p130 = scmp.eq.s32.totalorder %s23, 0
      %p131 = por %p129, %p130
      %p132 = scmp.ne.s32.totalorder %s118, %s119
      %p133 = scmp.eq.s32.totalorder %s24, 3
      %p134 = por %p132, %p133
      %p136 = scmp.ne.s32.totalorder %s119, %s135
      %p137 = scmp.eq.s32.totalorder %s24, 0
      %p138 = por %p136, %p137
      %p139 = scmp.le.s32.totalorder 1, %s18
      %p140 = scmp.lt.s32.totalorder %s18, 5
      %p141 = pnand %p139, %p140
      %p142 = pneg %p141
      // Predicated region
      $region9: #{tpu_custom_call.1} parent=5 // pred_check
        _
      $region10: #{tpu_custom_call.1} parent=5 // pred_check_branch
        %144 = sbr.rel (%p141) target = $region12
      $region11: #{tpu_custom_call.1} parent=5 // pred_region
        %s145 = ssub.s32 %s18, 1
        // Predicated region
        $region13: #{tpu_custom_call.1} parent=11 // pred_check
          %p146 = pneg %p105
        $region14: #{tpu_custom_call.1} parent=11 // pred_check_branch
          %148 = sbr.rel (%p146) target = $region16
        $region15: #{tpu_custom_call.1} parent=11 // pred_region
          _
        $region16: #{tpu_custom_call.1} parent=11 // pred_fallthru
          _
      $region12: #{tpu_custom_call.1} parent=5 // pred_fallthru
        _
      %p149 = scmp.lt.s32.totalorder %s18, 4
      // Predicated region
      $region17: #{tpu_custom_call.1} parent=5 // pred_check
        %p150 = pneg %p149
      $region18: #{tpu_custom_call.1} parent=5 // pred_check_branch
        %152 = sbr.rel (%p150) target = $region20
      $region19: #{tpu_custom_call.1} parent=5 // pred_region
        // Predicated region
        $region21: #{tpu_custom_call.1} parent=19 // pred_check
          %p153 = pneg %p52
        $region22: #{tpu_custom_call.1} parent=19 // pred_check_branch
          %155 = sbr.rel (%p153) target = $region24
        $region23: #{tpu_custom_call.1} parent=19 // pred_region
          %s156 = sand.u32 %s42, 1
          %s157 = scalar_lea.sflag [#allocation4], %s156
          %s158 = sand.u32 %s42, 1
          %s159 = smul.addr %s158, 64
          %s160 = scalar_lea.vmem [#allocation3], %s159
          %s161 = smul.u32 16, %s25
          %s163 = ssub.s32 1024, 1024
          %164 = vsyncadd %s157, %s163
          %s165 = smul.addr %s161, 2
          %s166 = sadd.s32 %s26, %s165
          %s167 = smul.addr %s166, 64
          %s168 = scalar_lea.hbm %s0, %s167
          %s169 = sshll.u32 %s160, 4
          %s170 = int_to_ptr.vmem [resolvable:$true] %s169
          %175 = dma.hbm_to_vmem [thread:$0]  %s168, 1024, %s170, %s157, 128, 64, 4
        $region24: #{tpu_custom_call.1} parent=19 // pred_fallthru
          _
        // Predicated region
        $region25: #{tpu_custom_call.1} parent=19 // pred_check
          %p176 = pneg %p78
        $region26: #{tpu_custom_call.1} parent=19 // pred_check_branch
          %178 = sbr.rel (%p176) target = $region28
        $region27: #{tpu_custom_call.1} parent=19 // pred_region
          %s179 = sand.u32 %s68, 1
          %s180 = scalar_lea.sflag [#allocation7], %s179
          %s181 = sand.u32 %s68, 1
          %s182 = smul.addr %s181, 64
          %s183 = scalar_lea.vmem [#allocation6], %s182
          %s184 = smul.u32 16, %s26
          %s186 = ssub.s32 1024, 1024
          %187 = vsyncadd %s180, %s186
          %s188 = smul.addr %s184, 64
          %s189 = scalar_lea.hbm %s1, %s188
          %s190 = sshll.u32 %s183, 4
          %s191 = int_to_ptr.vmem [resolvable:$true] %s190
          %196 = dma.hbm_to_vmem [thread:$0]  %s189, 1024, %s191, %s180, 64, 64, 4
        $region28: #{tpu_custom_call.1} parent=19 // pred_fallthru
          _
      $region20: #{tpu_custom_call.1} parent=5 // pred_fallthru
        _
      %p197 = scmp.le.s32.totalorder 1, %s18
      %p198 = scmp.lt.s32.totalorder %s18, 5
      %p199 = pnand %p197, %p198
      %p200 = pneg %p199
      // Predicated region
      $region29: #{tpu_custom_call.1} parent=5 // pred_check
        _
      $region30: #{tpu_custom_call.1} parent=5 // pred_check_branch
        %202 = sbr.rel (%p199) target = $region32
      $region31: #{tpu_custom_call.1} parent=5 // pred_region
        %s203 = ssub.s32 %s18, 1
        %s204 = sand.u32 %s45, 1
        %s205 = scalar_lea.sflag [#allocation4], %s204
        %s206 = sand.u32 %s45, 1
        %s207 = smul.addr %s206, 64
        %s208 = scalar_lea.vmem [#allocation3], %s207
        // Predicated region
        $region33: #{tpu_custom_call.1} parent=31 // pred_check
          %p209 = pneg %p58
        $region34: #{tpu_custom_call.1} parent=31 // pred_check_branch
          %211 = sbr.rel (%p209) target = $region36
        $region35: #{tpu_custom_call.1} parent=31 // pred_region
          %212 = dma.done %s205, 1024
        $region36: #{tpu_custom_call.1} parent=31 // pred_fallthru
          _
        %s213 = sand.u32 %s71, 1
        %s214 = scalar_lea.sflag [#allocation7], %s213
        %s215 = sand.u32 %s71, 1
        %s216 = smul.addr %s215, 64
        %s217 = scalar_lea.vmem [#allocation6], %s216
        // Predicated region
        $region37: #{tpu_custom_call.1} parent=31 // pred_check
          %p218 = pneg %p84
        $region38: #{tpu_custom_call.1} parent=31 // pred_check_branch
          %220 = sbr.rel (%p218) target = $region40
        $region39: #{tpu_custom_call.1} parent=31 // pred_region
          %221 = dma.done %s214, 1024
        $region40: #{tpu_custom_call.1} parent=31 // pred_fallthru
          _
        %s222 = sand.u32 %s45, 1
        %s223 = scalar_lea.sflag [#allocation4], %s222
        %s224 = sand.u32 %s45, 1
        %s225 = smul.addr %s224, 64
        %s226 = scalar_lea.vmem [#allocation3], %s225
        %p227 = pneg %p58
        %p228 = pneg %p55
        %s229 = sand.u32 %s71, 1
        %s230 = scalar_lea.sflag [#allocation7], %s229
        %s231 = sand.u32 %s71, 1
        %s232 = smul.addr %s231, 64
        %s233 = scalar_lea.vmem [#allocation6], %s232
        %p234 = pneg %p84
        %p235 = pneg %p81
        %p236 = pneg %p105
        %p237 = pneg %p102
        %p238 = pneg %p131
        %p239 = pneg %p128
        %s240 = sand.u32 %s118, 1
        %s241 = scalar_lea.sflag [#allocation5], %s240
        %s242 = sand.u32 %s118, 1
        %s243 = smul.addr %s242, 128
        %s244 = scalar_lea.vmem [#allocation8], %s243
        %s245 = smul.u32 16, %s27
        %s246 = smul.u32 16, %s28
        %s247 = smul.u32 16, %s27
        %p249 = scmp.eq.s32.totalorder %s28, 0
        // Predicated region
        $region41: #{tpu_custom_call.1} parent=31 // pred_check
          %p250 = pneg %p249
        $region42: #{tpu_custom_call.1} parent=31 // pred_check_branch
          %252 = sbr.rel (%p250) target = $region44
        $region43: #{tpu_custom_call.1} parent=31 // pred_region
          %253 = vst [vmem:[#allocation2] sm:$0xff] 0.0
          %254 = vst [vmem:[#allocation2 + $0x8] sm:$0xff] 0.0
          %255 = vst [vmem:[#allocation2 + $0x10] sm:$0xff] 0.0
          %256 = vst [vmem:[#allocation2 + $0x18] sm:$0xff] 0.0
          %257 = vst [vmem:[#allocation2 + $0x20] sm:$0xff] 0.0
          %258 = vst [vmem:[#allocation2 + $0x28] sm:$0xff] 0.0
          %259 = vst [vmem:[#allocation2 + $0x30] sm:$0xff] 0.0
          %260 = vst [vmem:[#allocation2 + $0x38] sm:$0xff] 0.0
          %261 = vst [vmem:[#allocation2 + $0x40] sm:$0xff] 0.0
          %262 = vst [vmem:[#allocation2 + $0x48] sm:$0xff] 0.0
          %263 = vst [vmem:[#allocation2 + $0x50] sm:$0xff] 0.0
          %264 = vst [vmem:[#allocation2 + $0x58] sm:$0xff] 0.0
          %265 = vst [vmem:[#allocation2 + $0x60] sm:$0xff] 0.0
          %266 = vst [vmem:[#allocation2 + $0x68] sm:$0xff] 0.0
          %267 = vst [vmem:[#allocation2 + $0x70] sm:$0xff] 0.0
          %268 = vst [vmem:[#allocation2 + $0x78] sm:$0xff] 0.0
        $region44: #{tpu_custom_call.1} parent=31 // pred_fallthru
          _
        %v269 = vld [vmem:[#allocation2] sm:$0xff]
        %v270 = vld [vmem:[#allocation2 + $0x8] sm:$0xff]
        %v271 = vld [vmem:[#allocation2 + $0x10] sm:$0xff]
        %v272 = vld [vmem:[#allocation2 + $0x18] sm:$0xff]
        %v273 = vld [vmem:[#allocation2 + $0x20] sm:$0xff]
        %v274 = vld [vmem:[#allocation2 + $0x28] sm:$0xff]
        %v275 = vld [vmem:[#allocation2 + $0x30] sm:$0xff]
        %v276 = vld [vmem:[#allocation2 + $0x38] sm:$0xff]
        %v277 = vld [vmem:[#allocation2 + $0x40] sm:$0xff]
        %v278 = vld [vmem:[#allocation2 + $0x48] sm:$0xff]
        %v279 = vld [vmem:[#allocation2 + $0x50] sm:$0xff]
        %v280 = vld [vmem:[#allocation2 + $0x58] sm:$0xff]
        %v281 = vld [vmem:[#allocation2 + $0x60] sm:$0xff]
        %v282 = vld [vmem:[#allocation2 + $0x68] sm:$0xff]
        %v283 = vld [vmem:[#allocation2 + $0x70] sm:$0xff]
        %v284 = vld [vmem:[#allocation2 + $0x78] sm:$0xff]
        %v285 = vld [vmem:[%s208] sm:$0xf]
        %v286 = vld [vmem:[%s208 + $0x4] sm:$0xf]
        %v287 = vld [vmem:[%s208 + $0x8] sm:$0xf]
        %v288 = vld [vmem:[%s208 + $0xc] sm:$0xf]
        %v289 = vld [vmem:[%s208 + $0x10] sm:$0xf]
        %v290 = vld [vmem:[%s208 + $0x14] sm:$0xf]
        %v291 = vld [vmem:[%s208 + $0x18] sm:$0xf]
        %v292 = vld [vmem:[%s208 + $0x1c] sm:$0xf]
        %v293 = vld [vmem:[%s208 + $0x20] sm:$0xf]
        %v294 = vld [vmem:[%s208 + $0x24] sm:$0xf]
        %v295 = vld [vmem:[%s208 + $0x28] sm:$0xf]
        %v296 = vld [vmem:[%s208 + $0x2c] sm:$0xf]
        %v297 = vld [vmem:[%s208 + $0x30] sm:$0xf]
        %v298 = vld [vmem:[%s208 + $0x34] sm:$0xf]
        %v299 = vld [vmem:[%s208 + $0x38] sm:$0xf]
        %v300 = vld [vmem:[%s208 + $0x3c] sm:$0xf]
        %v301 = vld [vmem:[%s217] sm:$0xf]
        %v302 = vld [vmem:[%s217 + $0x4] sm:$0xf]
        %v303 = vld [vmem:[%s217 + $0x8] sm:$0xf]
        %v304 = vld [vmem:[%s217 + $0xc] sm:$0xf]
        %v305 = vld [vmem:[%s217 + $0x10] sm:$0xf]
        %v306 = vld [vmem:[%s217 + $0x14] sm:$0xf]
        %v307 = vld [vmem:[%s217 + $0x18] sm:$0xf]
        %v308 = vld [vmem:[%s217 + $0x1c] sm:$0xf]
        %v309 = vld [vmem:[%s217 + $0x20] sm:$0xf]
        %v310 = vld [vmem:[%s217 + $0x24] sm:$0xf]
        %v311 = vld [vmem:[%s217 + $0x28] sm:$0xf]
        %v312 = vld [vmem:[%s217 + $0x2c] sm:$0xf]
        %v313 = vld [vmem:[%s217 + $0x30] sm:$0xf]
        %v314 = vld [vmem:[%s217 + $0x34] sm:$0xf]
        %v315 = vld [vmem:[%s217 + $0x38] sm:$0xf]
        %v316 = vld [vmem:[%s217 + $0x3c] sm:$0xf]
        %v333 = vunpack.c.l.b16 %v285
        %v334 = vunpack.c.l.b16 %v286
        %v335 = vunpack.c.l.b16 %v287
        %v336 = vunpack.c.l.b16 %v288
        %v337 = vunpack.c.l.b16 %v289
        %v338 = vunpack.c.l.b16 %v290
        %v339 = vunpack.c.l.b16 %v291
        %v340 = vunpack.c.l.b16 %v292
        %v341 = vunpack.c.l.b16 %v293
        %v342 = vunpack.c.l.b16 %v294
        %v343 = vunpack.c.l.b16 %v295
        %v344 = vunpack.c.l.b16 %v296
        %v345 = vunpack.c.l.b16 %v297
        %v346 = vunpack.c.l.b16 %v298
        %v347 = vunpack.c.l.b16 %v299
        %v348 = vunpack.c.l.b16 %v300
        %v349 = vpack.c.b16 %v334, %v333
        %v350 = vpack.c.b16 %v336, %v335
        %v351 = vpack.c.b16 %v338, %v337
        %v352 = vpack.c.b16 %v340, %v339
        %v353 = vpack.c.b16 %v342, %v341
        %v354 = vpack.c.b16 %v344, %v343
        %v355 = vpack.c.b16 %v346, %v345
        %v356 = vpack.c.b16 %v348, %v347
        %v381 = vunpack.c.l.b16 %v301
        %v382 = vunpack.c.l.b16 %v302
        %v383 = vunpack.c.l.b16 %v303
        %v384 = vunpack.c.l.b16 %v304
        %v385 = vunpack.c.l.b16 %v305
        %v386 = vunpack.c.l.b16 %v306
        %v387 = vunpack.c.l.b16 %v307
        %v388 = vunpack.c.l.b16 %v308
        %v389 = vunpack.c.l.b16 %v309
        %v390 = vunpack.c.l.b16 %v310
        %v391 = vunpack.c.l.b16 %v311
        %v392 = vunpack.c.l.b16 %v312
        %v393 = vunpack.c.l.b16 %v313
        %v394 = vunpack.c.l.b16 %v314
        %v395 = vunpack.c.l.b16 %v315
        %v396 = vunpack.c.l.b16 %v316
        %v397 = vpack.c.b16 %v382, %v381
        %v398 = vpack.c.b16 %v384, %v383
        %v399 = vpack.c.b16 %v386, %v385
        %v400 = vpack.c.b16 %v388, %v387
        %v401 = vpack.c.b16 %v390, %v389
        %v402 = vpack.c.b16 %v392, %v391
        %v403 = vpack.c.b16 %v394, %v393
        %v404 = vpack.c.b16 %v396, %v395
        %413 = vmatprep.subr.bf16.mxu0 0
        %414 = vmatpush1.bf16.msra.mxu0 %v397
        %415 = vmatprep.subr.bf16.mxu0 0
        %416 = vmatpush1.bf16.msra.mxu0 %v398
        %417 = vmatprep.subr.bf16.mxu0 0
        %418 = vmatpush1.bf16.msra.mxu0 %v399
        %419 = vmatprep.subr.bf16.mxu0 0
        %420 = vmatpush1.bf16.msra.mxu0 %v400
        %421 = vmatprep.subr.bf16.mxu0 0
        %422 = vmatpush1.bf16.msra.mxu0 %v401
        %423 = vmatprep.subr.bf16.mxu0 0
        %424 = vmatpush1.bf16.msra.mxu0 %v402
        %425 = vmatprep.subr.bf16.mxu0 0
        %426 = vmatpush1.bf16.msra.mxu0 %v403
        %427 = vmatprep.subr.bf16.mxu0 0
        %428 = vmatpush1.bf16.msra.mxu0 %v404
        %429 = vmatprep.subr.bf16.mxu0 0
        %430 = vmatpush1.bf16.msra.mxu0 0
        %431 = vmatprep.subr.bf16.mxu0 0
        %432 = vmatpush1.bf16.msra.mxu0 0
        %433 = vmatprep.subr.bf16.mxu0 0
        %434 = vmatpush1.bf16.msra.mxu0 0
        %435 = vmatprep.subr.bf16.mxu0 0
        %436 = vmatpush1.bf16.msra.mxu0 0
        %437 = vmatprep.subr.bf16.mxu0 0
        %438 = vmatpush1.bf16.msra.mxu0 0
        %439 = vmatprep.subr.bf16.mxu0 0
        %440 = vmatpush1.bf16.msra.mxu0 0
        %441 = vmatprep.subr.bf16.mxu0 0
        %442 = vmatpush1.bf16.msra.mxu0 0
        %443 = vmatprep.subr.bf16.mxu0 0
        %444 = vmatpush1.bf16.msra.mxu0 0
        %445 = vmatprep.mubr.bf16.mxu0 0
        %446 = vmatmul.mubr.bf16.gmra.mrb[0].mxu0 %v349
        %v447 = vpop.f32.mrb[0].mxu0
        %v448 = vadd.f32 0.0, %v447
        %v449 = vpop.f32.mrb[0].mxu0
        %v450 = vpop.f32.mrb[0].mxu0
        %v451 = vadd.f32 0.0, %v450
        %v452 = vpop.f32.mrb[0].mxu0
        %453 = vmatprep.mubr.bf16.mxu0 0
        %454 = vmatmul.mubr.bf16.gmra.mrb[0].mxu0 %v350
        %v455 = vpop.f32.mrb[0].mxu0
        %v456 = vadd.f32 0.0, %v455
        %v457 = vpop.f32.mrb[0].mxu0
        %v458 = vpop.f32.mrb[0].mxu0
        %v459 = vadd.f32 0.0, %v458
        %v460 = vpop.f32.mrb[0].mxu0
        %461 = vmatprep.mubr.bf16.mxu0 0
        %462 = vmatmul.mubr.bf16.gmra.mrb[0].mxu0 %v351
        %v463 = vpop.f32.mrb[0].mxu0
        %v464 = vadd.f32 0.0, %v463
        %v465 = vpop.f32.mrb[0].mxu0
        %v466 = vpop.f32.mrb[0].mxu0
        %v467 = vadd.f32 0.0, %v466
        %v468 = vpop.f32.mrb[0].mxu0
        %469 = vmatprep.mubr.bf16.mxu0 0
        %470 = vmatmul.mubr.bf16.gmra.mrb[0].mxu0 %v352
        %v471 = vpop.f32.mrb[0].mxu0
        %v472 = vadd.f32 0.0, %v471
        %v473 = vpop.f32.mrb[0].mxu0
        %v474 = vpop.f32.mrb[0].mxu0
        %v475 = vadd.f32 0.0, %v474
        %v476 = vpop.f32.mrb[0].mxu0
        %477 = vmatprep.mubr.bf16.mxu0 0
        %478 = vmatmul.mubr.bf16.gmra.mrb[0].mxu0 %v353
        %v479 = vpop.f32.mrb[0].mxu0
        %v480 = vadd.f32 0.0, %v479
        %v481 = vpop.f32.mrb[0].mxu0
        %v482 = vpop.f32.mrb[0].mxu0
        %v483 = vadd.f32 0.0, %v482
        %v484 = vpop.f32.mrb[0].mxu0
        %485 = vmatprep.mubr.bf16.mxu0 0
        %486 = vmatmul.mubr.bf16.gmra.mrb[0].mxu0 %v354
        %v487 = vpop.f32.mrb[0].mxu0
        %v488 = vadd.f32 0.0, %v487
        %v489 = vpop.f32.mrb[0].mxu0
        %v490 = vpop.f32.mrb[0].mxu0
        %v491 = vadd.f32 0.0, %v490
        %v492 = vpop.f32.mrb[0].mxu0
        %493 = vmatprep.mubr.bf16.mxu0 0
        %494 = vmatmul.mubr.bf16.gmra.mrb[0].mxu0 %v355
        %v495 = vpop.f32.mrb[0].mxu0
        %v496 = vadd.f32 0.0, %v495
        %v497 = vpop.f32.mrb[0].mxu0
        %v498 = vpop.f32.mrb[0].mxu0
        %v499 = vadd.f32 0.0, %v498
        %v500 = vpop.f32.mrb[0].mxu0
        %501 = vmatprep.mubr.bf16.mxu0 0
        %502 = vmatmul.mubr.bf16.gmra.mrb[0].mxu0 %v356
        %v503 = vpop.f32.mrb[0].mxu0
        %v504 = vadd.f32 0.0, %v503
        %v505 = vpop.f32.mrb[0].mxu0
        %v506 = vpop.f32.mrb[0].mxu0
        %v507 = vadd.f32 0.0, %v506
        %v508 = vpop.f32.mrb[0].mxu0
        %509 = vdwg.mxu0
        %v510 = vadd.f32 %v269, %v448
        %v511 = vadd.f32 %v270, %v451
        %v512 = vadd.f32 %v271, %v456
        %v513 = vadd.f32 %v272, %v459
        %v514 = vadd.f32 %v273, %v464
        %v515 = vadd.f32 %v274, %v467
        %v516 = vadd.f32 %v275, %v472
        %v517 = vadd.f32 %v276, %v475
        %v518 = vadd.f32 %v277, %v480
        %v519 = vadd.f32 %v278, %v483
        %v520 = vadd.f32 %v279, %v488
        %v521 = vadd.f32 %v280, %v491
        %v522 = vadd.f32 %v281, %v496
        %v523 = vadd.f32 %v282, %v499
        %v524 = vadd.f32 %v283, %v504
        %v525 = vadd.f32 %v284, %v507
        %526 = vst [vmem:[#allocation2] sm:$0xff] %v510
        %527 = vst [vmem:[#allocation2 + $0x8] sm:$0xff] %v511
        %528 = vst [vmem:[#allocation2 + $0x10] sm:$0xff] %v512
        %529 = vst [vmem:[#allocation2 + $0x18] sm:$0xff] %v513
        %530 = vst [vmem:[#allocation2 + $0x20] sm:$0xff] %v514
        %531 = vst [vmem:[#allocation2 + $0x28] sm:$0xff] %v515
        %532 = vst [vmem:[#allocation2 + $0x30] sm:$0xff] %v516
        %533 = vst [vmem:[#allocation2 + $0x38] sm:$0xff] %v517
        %534 = vst [vmem:[#allocation2 + $0x40] sm:$0xff] %v518
        %535 = vst [vmem:[#allocation2 + $0x48] sm:$0xff] %v519
        %536 = vst [vmem:[#allocation2 + $0x50] sm:$0xff] %v520
        %537 = vst [vmem:[#allocation2 + $0x58] sm:$0xff] %v521
        %538 = vst [vmem:[#allocation2 + $0x60] sm:$0xff] %v522
        %539 = vst [vmem:[#allocation2 + $0x68] sm:$0xff] %v523
        %540 = vst [vmem:[#allocation2 + $0x70] sm:$0xff] %v524
        %541 = vst [vmem:[#allocation2 + $0x78] sm:$0xff] %v525
        %p542 = scmp.eq.s32.totalorder %s28, 1
        // Predicated region
        $region45: #{tpu_custom_call.1} parent=31 // pred_check
          %p543 = pneg %p542
        $region46: #{tpu_custom_call.1} parent=31 // pred_check_branch
          %545 = sbr.rel (%p543) target = $region48
        $region47: #{tpu_custom_call.1} parent=31 // pred_region
          %v546 = vld [vmem:[#allocation2] sm:$0xff]
          %v547 = vld [vmem:[#allocation2 + $0x8] sm:$0xff]
          %v548 = vld [vmem:[#allocation2 + $0x10] sm:$0xff]
          %v549 = vld [vmem:[#allocation2 + $0x18] sm:$0xff]
          %v550 = vld [vmem:[#allocation2 + $0x20] sm:$0xff]
          %v551 = vld [vmem:[#allocation2 + $0x28] sm:$0xff]
          %v552 = vld [vmem:[#allocation2 + $0x30] sm:$0xff]
          %v553 = vld [vmem:[#allocation2 + $0x38] sm:$0xff]
          %v554 = vld [vmem:[#allocation2 + $0x40] sm:$0xff]
          %v555 = vld [vmem:[#allocation2 + $0x48] sm:$0xff]
          %v556 = vld [vmem:[#allocation2 + $0x50] sm:$0xff]
          %v557 = vld [vmem:[#allocation2 + $0x58] sm:$0xff]
          %v558 = vld [vmem:[#allocation2 + $0x60] sm:$0xff]
          %v559 = vld [vmem:[#allocation2 + $0x68] sm:$0xff]
          %v560 = vld [vmem:[#allocation2 + $0x70] sm:$0xff]
          %v561 = vld [vmem:[#allocation2 + $0x78] sm:$0xff]
          %v562 = vld [vmem:[%s2] sm:$0x1]
          %v564 = vlaneseq
          %v565 = vshrl.u32 %v564, 7
          %v566 = vsub.s32 0, %v565
          %v567 = vrot.slane %v562, %v566
          %v569 = vadd.f32 %v546, %v567
          %v570 = vadd.f32 %v547, %v567
          %v571 = vadd.f32 %v548, %v567
          %v572 = vadd.f32 %v549, %v567
          %v573 = vadd.f32 %v550, %v567
          %v574 = vadd.f32 %v551, %v567
          %v575 = vadd.f32 %v552, %v567
          %v576 = vadd.f32 %v553, %v567
          %v577 = vadd.f32 %v554, %v567
          %v578 = vadd.f32 %v555, %v567
          %v579 = vadd.f32 %v556, %v567
          %v580 = vadd.f32 %v557, %v567
          %v581 = vadd.f32 %v558, %v567
          %v582 = vadd.f32 %v559, %v567
          %v583 = vadd.f32 %v560, %v567
          %v584 = vadd.f32 %v561, %v567
          %v585 = vmax.f32 %v569, 0.0
          %v586 = vmax.f32 %v570, 0.0
          %v587 = vmax.f32 %v571, 0.0
          %v588 = vmax.f32 %v572, 0.0
          %v589 = vmax.f32 %v573, 0.0
          %v590 = vmax.f32 %v574, 0.0
          %v591 = vmax.f32 %v575, 0.0
          %v592 = vmax.f32 %v576, 0.0
          %v593 = vmax.f32 %v577, 0.0
          %v594 = vmax.f32 %v578, 0.0
          %v595 = vmax.f32 %v579, 0.0
          %v596 = vmax.f32 %v580, 0.0
          %v597 = vmax.f32 %v581, 0.0
          %v598 = vmax.f32 %v582, 0.0
          %v599 = vmax.f32 %v583, 0.0
          %v600 = vmax.f32 %v584, 0.0
          %601 = vst [vmem:[%s244] sm:$0xff] %v585
          %602 = vst [vmem:[%s244 + $0x8] sm:$0xff] %v586
          %603 = vst [vmem:[%s244 + $0x10] sm:$0xff] %v587
          %604 = vst [vmem:[%s244 + $0x18] sm:$0xff] %v588
          %605 = vst [vmem:[%s244 + $0x20] sm:$0xff] %v589
          %606 = vst [vmem:[%s244 + $0x28] sm:$0xff] %v590
          %607 = vst [vmem:[%s244 + $0x30] sm:$0xff] %v591
          %608 = vst [vmem:[%s244 + $0x38] sm:$0xff] %v592
          %609 = vst [vmem:[%s244 + $0x40] sm:$0xff] %v593
          %610 = vst [vmem:[%s244 + $0x48] sm:$0xff] %v594
          %611 = vst [vmem:[%s244 + $0x50] sm:$0xff] %v595
          %612 = vst [vmem:[%s244 + $0x58] sm:$0xff] %v596
          %613 = vst [vmem:[%s244 + $0x60] sm:$0xff] %v597
          %614 = vst [vmem:[%s244 + $0x68] sm:$0xff] %v598
          %615 = vst [vmem:[%s244 + $0x70] sm:$0xff] %v599
          %616 = vst [vmem:[%s244 + $0x78] sm:$0xff] %v600
        $region48: #{tpu_custom_call.1} parent=31 // pred_fallthru
          _
        %s617 = sand.u32 %s118, 1
        %s618 = scalar_lea.sflag [#allocation5], %s617
        %s619 = sand.u32 %s118, 1
        %s620 = smul.addr %s619, 128
        %s621 = scalar_lea.vmem [#allocation8], %s620
        // Predicated region
        $region49: #{tpu_custom_call.1} parent=31 // pred_check
          %p622 = pneg %p128
        $region50: #{tpu_custom_call.1} parent=31 // pred_check_branch
          %624 = sbr.rel (%p622) target = $region52
        $region51: #{tpu_custom_call.1} parent=31 // pred_region
          %s625 = smul.u32 16, %s27
          %s627 = ssub.s32 2048, 2048
          %628 = vsyncadd %s618, %s627
          %s629 = smul.addr %s625, 128
          %s630 = scalar_lea.hbm %s3, %s629
          %s631 = sshll.u32 %s621, 4
          %s632 = int_to_ptr.vmem [resolvable:$true] %s631
          %637 = dma.vmem_to_hbm [thread:$0]  %s632, 2048, %s630, %s618, 128, 128, 8
        $region52: #{tpu_custom_call.1} parent=31 // pred_fallthru
          _
      $region32: #{tpu_custom_call.1} parent=5 // pred_fallthru
        _
      %p638 = scmp.le.s32.totalorder 2, %s18
      // Predicated region
      $region53: #{tpu_custom_call.1} parent=5 // pred_check
        %p639 = pneg %p638
      $region54: #{tpu_custom_call.1} parent=5 // pred_check_branch
        %641 = sbr.rel (%p639) target = $region56
      $region55: #{tpu_custom_call.1} parent=5 // pred_region
        %s642 = ssub.s32 %s18, 2
        // Predicated region
        $region57: #{tpu_custom_call.1} parent=55 // pred_check
          %p643 = pneg %p134
        $region58: #{tpu_custom_call.1} parent=55 // pred_check_branch
          %645 = sbr.rel (%p643) target = $region60
        $region59: #{tpu_custom_call.1} parent=55 // pred_region
          %s646 = sand.u32 %s119, 1
          %s647 = scalar_lea.sflag [#allocation5], %s646
          %s648 = sand.u32 %s119, 1
          %s649 = smul.addr %s648, 128
          %s650 = scalar_lea.vmem [#allocation8], %s649
          %651 = dma.done %s647, 2048
        $region60: #{tpu_custom_call.1} parent=55 // pred_fallthru
          _
      $region56: #{tpu_custom_call.1} parent=5 // pred_fallthru
        _
    $region6: #{tpu_custom_call.1} parent=1 // loop_footer
      %s22 = sadd.s32 1, %s18
    $region7: #{tpu_custom_call.1} parent=1 // loop_footer_branch
      %17 = sbr.rel target = $region3
    $region8: #{tpu_custom_call.1} parent=1 // loop_exit
      _
    %652 = vsyncpa [#allocation4], 1
    %s653 = scalar_lea.sflag [#allocation4], 1
    %654 = vsyncpa %s653, 1
    %655 = vsyncpa [#allocation7], 1
    %s656 = scalar_lea.sflag [#allocation7], 1
    %657 = vsyncpa %s656, 1
    %658 = vsyncpa [#allocation5], 1
    %s659 = scalar_lea.sflag [#allocation5], 1
    %660 = vsyncpa %s659, 1

</llo_original>
